<compile_context>
chip_gen: v6e
topology: v6e:2x2x1
jax: 0.10.0
libtpu: 0.0.40
codegen_flags: <defaults>
</compile_context>

<pallas_src>
import jax
import jax.numpy as jnp
from jax import lax
from jax.experimental import pallas as pl
from jax.experimental.pallas import tpu as pltpu


def _renderer_kernel(feat_ref, w_ref, bg_ref, out_ref):
    # feat_ref: (S, N, TR) VMEM; w_ref: (S, 1, TR); bg_ref: (3, TR); out_ref: (N, TR)
    S = feat_ref.shape[0]
    N, TR = out_ref.shape

    def body(s, carry):
        comp, accw = carry
        # nan_to_num per (N, TR) slab (also clamps +/-inf, matching torch defaults).
        f = jnp.nan_to_num(feat_ref[s].astype(jnp.float32))       # (N, TR)
        w = w_ref[s].astype(jnp.float32)                          # (1, TR)
        return comp + w * f, accw + w

    comp, accw = lax.fori_loop(
        0, S, body,
        (jnp.zeros((N, TR), jnp.float32), jnp.zeros((1, TR), jnp.float32)),
        unroll=True if S <= 32 else 8)

    # Full lane-dense store, then blend the random background into the RGB
    # channels only (sublane rows 0..2) -- tiny masked overwrite.
    out_ref[...] = comp.astype(out_ref.dtype)
    rgb = comp[0:3, :] + bg_ref[...].astype(jnp.float32) * (1.0 - accw)
    out_ref[0:3, :] = rgb.astype(out_ref.dtype)


def _pick_tile_rays(num_rays, num_samples, num_channels, feat_bytes, w_bytes, out_bytes):
    """Largest lane tile (multiple of 128) that fits the VMEM budget."""
    try:
        vmem_cap = pltpu.get_tpu_info().vmem_capacity_bytes
    except Exception:           # conservative fallback: v7x has 64 MiB per TC
        vmem_cap = 64 << 20
    budget = min(vmem_cap // 4, 24 << 20)
    # Double-buffered VMEM bytes per ray across all pipelined operands.
    per_ray = 2 * (num_samples * num_channels * feat_bytes
                   + num_samples * w_bytes + 3 * 4 + num_channels * out_bytes)
    tile = budget // max(per_ray, 1)
    # Register-pressure cap: keep the (N, tile) f32 accumulator + one feature
    # slab around <=32 vregs so the S-accumulate stays in registers.
    tile = min(tile, 16384 // max(num_channels, 1))
    # Keep >= ~4 grid steps so megacore sharding / DMA pipelining have work.
    tile = min(tile, (num_rays + 3) // 4 + 127)
    tile = max(128, (tile // 128) * 128)
    return int(tile)


def feature_renderer_forward(features_snr, weights_s1r, background_3r, *, tile_rays=None):
    """features: (S, N, R), weights: (S, 1, R), background: (3, R); returns (N, R)."""
    S, N, R = features_snr.shape
    assert weights_s1r.shape == (S, 1, R)
    assert background_3r.shape == (3, R)
    assert N >= 3

    feat_bytes = features_snr.dtype.itemsize
    w_bytes = weights_s1r.dtype.itemsize
    out_dtype = features_snr.dtype
    out_bytes = jnp.dtype(out_dtype).itemsize

    if tile_rays is None:
        tile_rays = _pick_tile_rays(R, S, N, feat_bytes, w_bytes, out_bytes)

    # Ragged tail: pad rays to a multiple of the tile (zero weights => zero
    # contribution; padded rays are sliced off the output).
    r_pad = pl.cdiv(R, tile_rays) * tile_rays
    if r_pad != R:
        pad = r_pad - R
        features_snr = jnp.pad(features_snr, ((0, 0), (0, 0), (0, pad)))
        weights_s1r = jnp.pad(weights_s1r, ((0, 0), (0, 0), (0, pad)))
        background_3r = jnp.pad(background_3r, ((0, 0), (0, pad)))

    footprint = 2 * tile_rays * (S * N * feat_bytes + S * w_bytes
                                 + 3 * background_3r.dtype.itemsize + N * out_bytes)
    try:
        vmem_cap = pltpu.get_tpu_info().vmem_capacity_bytes
    except Exception:
        vmem_cap = 64 << 20
    vmem_limit = int(min(vmem_cap - (8 << 20), max(32 << 20, footprint + (8 << 20))))

    cost = pl.CostEstimate(
        flops=2 * R * S * N + R * S + 6 * R,
        transcendentals=0,
        bytes_accessed=R * (S * N * feat_bytes + S * w_bytes + 3 * 4 + N * out_bytes),
    )

    grid = (r_pad // tile_rays,)
    out = pl.pallas_call(
        _renderer_kernel,
        out_shape=jax.ShapeDtypeStruct((N, r_pad), out_dtype),
        grid_spec=pltpu.PrefetchScalarGridSpec(
            num_scalar_prefetch=0,
            grid=grid,
            in_specs=[
                pl.BlockSpec((S, N, tile_rays), lambda i: (0, 0, i)),
                pl.BlockSpec((S, 1, tile_rays), lambda i: (0, 0, i)),
                pl.BlockSpec((3, tile_rays), lambda i: (0, i)),
            ],
            out_specs=pl.BlockSpec((N, tile_rays), lambda i: (0, i)),
        ),
        compiler_params=pltpu.CompilerParams(
            dimension_semantics=("parallel",),
            vmem_limit_bytes=vmem_limit),
        cost_estimate=cost,
    )(features_snr, weights_s1r, background_3r)
    return out[:, :R] if r_pad != R else out


def feature_renderer_reference(features_rsn, weights_rs1, background_rgb_r3):
    """Pure-JAX reference in the module's native (*bs, S, n) layout (eval mode)."""
    feat = jnp.nan_to_num(features_rsn)
    comp = jnp.sum(weights_rs1 * feat, axis=-2)
    acc = jnp.sum(weights_rs1, axis=-2)
    rgb = comp[..., 0:3] + background_rgb_r3 * (1.0 - acc)
    return comp.at[..., 0:3].set(rgb)


if __name__ == "__main__":
    key = jax.random.PRNGKey(0)
    k_f, k_w, k_bg = jax.random.split(key, 3)

    R, S, N = 1024, 16, 8          # rays, samples per ray, feature channels (>=3)

    # Producer-side rays-on-lanes layout (see header comment).
    features = jax.random.normal(k_f, (S, N, R), dtype=jnp.float32)
    # Exercise nan_to_num: NaN and +/-inf (torch.nan_to_num defaults clamp inf).
    features = features.at[0, 0, 0].set(jnp.nan)
    features = features.at[3, 2, 5].set(jnp.inf)
    features = features.at[7, 5, 9].set(-jnp.inf)

    raw_w = jax.random.uniform(k_w, (S, 1, R), dtype=jnp.float32)
    weights = raw_w / (jnp.sum(raw_w, axis=0, keepdims=True) + 0.5)    # (S, 1, R)

    # Deterministic stand-in for torch.rand_like 'random' background (per ray).
    background = jax.random.uniform(k_bg, (3, R), dtype=jnp.float32)   # (3, R)

    out_nr = feature_renderer_forward(features, weights, background)
    out_nr = jax.block_until_ready(out_nr)
    assert out_nr.shape == (N, R)

    ref = feature_renderer_reference(
        jnp.transpose(features, (2, 0, 1)),            # (R, S, N)
        jnp.transpose(weights, (2, 0, 1)),             # (R, S, 1)
        jnp.transpose(background, (1, 0)))             # (R, 3)
    assert jnp.allclose(out_nr.T, ref, atol=1e-5, rtol=1e-5), "mismatch vs reference"

    # TODO(synk): packed-sample path (nerfacc.accumulate_along_rays with
    # ray_indices) is a ray-indexed scatter-add and is not implemented here.
    print("KERNEL_OK")
</pallas_src>

<mosaic_0001>
module attributes {stable_mosaic.version = 11 : i64} {
  func.func @_renderer_kernel(%arg0: i32, %arg1: memref<16x8x256xf32, #tpu.memory_space<vmem>>, %arg2: memref<16x1x256xf32, #tpu.memory_space<vmem>>, %arg3: memref<3x256xf32, #tpu.memory_space<vmem>>, %arg4: memref<8x256xf32, #tpu.memory_space<vmem>>) attributes {dimension_semantics = [#tpu.dimension_semantics<parallel>], iteration_bounds = array<i64: 4>, scalar_prefetch = 0 : i64, scratch_operands = 0 : i64, tpu.core_type = #tpu.core_type<tc>, window_params = [{transform_indices = @transform_0, window_bounds = array<i64: 16, 8, 256>}, {transform_indices = @transform_1, window_bounds = array<i64: 16, 1, 256>}, {transform_indices = @transform_2, window_bounds = array<i64: 3, 256>}, {transform_indices = @transform_3, window_bounds = array<i64: 8, 256>}]} {
    %cst = arith.constant 0.000000e+00 : f32
    %0 = vector.broadcast %cst : f32 to vector<8x256xf32>
    %cst_0 = arith.constant 0.000000e+00 : f32
    %1 = vector.broadcast %cst_0 : f32 to vector<1x256xf32>
    %c0_i32 = arith.constant 0 : i32
    %2 = arith.index_cast %c0_i32 : i32 to index
    %c0 = arith.constant 0 : index
    %c0_1 = arith.constant 0 : index
    %3 = vector.load %arg1[%2, %c0, %c0_1] : memref<16x8x256xf32, #tpu.memory_space<vmem>>, vector<1x8x256xf32>
    %4 = vector.shape_cast %3 : vector<1x8x256xf32> to vector<8x256xf32>
    %5 = arith.cmpf one, %4, %4 : vector<8x256xf32>
    %cst_2 = arith.constant 0.000000e+00 : f32
    %6 = vector.broadcast %cst_2 : f32 to vector<8x256xf32>
    %7 = arith.select %5, %6, %4 : vector<8x256xi1>, vector<8x256xf32>
    %cst_3 = arith.constant 0x7F800000 : f32
    %8 = vector.broadcast %cst_3 : f32 to vector<8x256xf32>
    %9 = arith.cmpf oeq, %7, %8 : vector<8x256xf32>
    %cst_4 = arith.constant 3.40282347E+38 : f32
    %10 = vector.broadcast %cst_4 : f32 to vector<8x256xf32>
    %11 = arith.select %9, %10, %7 : vector<8x256xi1>, vector<8x256xf32>
    %cst_5 = arith.constant 0xFF800000 : f32
    %12 = vector.broadcast %cst_5 : f32 to vector<8x256xf32>
    %13 = arith.cmpf oeq, %11, %12 : vector<8x256xf32>
    %cst_6 = arith.constant -3.40282347E+38 : f32
    %14 = vector.broadcast %cst_6 : f32 to vector<8x256xf32>
    %15 = arith.select %13, %14, %11 : vector<8x256xi1>, vector<8x256xf32>
    %16 = arith.index_cast %c0_i32 : i32 to index
    %c0_7 = arith.constant 0 : index
    %c0_8 = arith.constant 0 : index
    %17 = vector.load %arg2[%16, %c0_7, %c0_8] : memref<16x1x256xf32, #tpu.memory_space<vmem>>, vector<1x1x256xf32>
    %18 = vector.shape_cast %17 : vector<1x1x256xf32> to vector<1x256xf32>
    %19 = vector.broadcast %18 : vector<1x256xf32> to vector<8x256xf32>
    %20 = arith.mulf %19, %15 : vector<8x256xf32>
    %21 = arith.addf %0, %20 : vector<8x256xf32>
    %22 = arith.addf %1, %18 : vector<1x256xf32>
    %c1_i32 = arith.constant 1 : i32
    %23 = arith.index_cast %c1_i32 : i32 to index
    %c0_9 = arith.constant 0 : index
    %c0_10 = arith.constant 0 : index
    %24 = vector.load %arg1[%23, %c0_9, %c0_10] : memref<16x8x256xf32, #tpu.memory_space<vmem>>, vector<1x8x256xf32>
    %25 = vector.shape_cast %24 : vector<1x8x256xf32> to vector<8x256xf32>
    %26 = arith.cmpf one, %25, %25 : vector<8x256xf32>
    %cst_11 = arith.constant 0.000000e+00 : f32
    %27 = vector.broadcast %cst_11 : f32 to vector<8x256xf32>
    %28 = arith.select %26, %27, %25 : vector<8x256xi1>, vector<8x256xf32>
    %cst_12 = arith.constant 0x7F800000 : f32
    %29 = vector.broadcast %cst_12 : f32 to vector<8x256xf32>
    %30 = arith.cmpf oeq, %28, %29 : vector<8x256xf32>
    %cst_13 = arith.constant 3.40282347E+38 : f32
    %31 = vector.broadcast %cst_13 : f32 to vector<8x256xf32>
    %32 = arith.select %30, %31, %28 : vector<8x256xi1>, vector<8x256xf32>
    %cst_14 = arith.constant 0xFF800000 : f32
    %33 = vector.broadcast %cst_14 : f32 to vector<8x256xf32>
    %34 = arith.cmpf oeq, %32, %33 : vector<8x256xf32>
    %cst_15 = arith.constant -3.40282347E+38 : f32
    %35 = vector.broadcast %cst_15 : f32 to vector<8x256xf32>
    %36 = arith.select %34, %35, %32 : vector<8x256xi1>, vector<8x256xf32>
    %37 = arith.index_cast %c1_i32 : i32 to index
    %c0_16 = arith.constant 0 : index
    %c0_17 = arith.constant 0 : index
    %38 = vector.load %arg2[%37, %c0_16, %c0_17] : memref<16x1x256xf32, #tpu.memory_space<vmem>>, vector<1x1x256xf32>
    %39 = vector.shape_cast %38 : vector<1x1x256xf32> to vector<1x256xf32>
    %40 = vector.broadcast %39 : vector<1x256xf32> to vector<8x256xf32>
    %41 = arith.mulf %40, %36 : vector<8x256xf32>
    %42 = arith.addf %21, %41 : vector<8x256xf32>
    %43 = arith.addf %22, %39 : vector<1x256xf32>
    %c2_i32 = arith.constant 2 : i32
    %44 = arith.index_cast %c2_i32 : i32 to index
    %c0_18 = arith.constant 0 : index
    %c0_19 = arith.constant 0 : index
    %45 = vector.load %arg1[%44, %c0_18, %c0_19] : memref<16x8x256xf32, #tpu.memory_space<vmem>>, vector<1x8x256xf32>
    %46 = vector.shape_cast %45 : vector<1x8x256xf32> to vector<8x256xf32>
    %47 = arith.cmpf one, %46, %46 : vector<8x256xf32>
    %cst_20 = arith.constant 0.000000e+00 : f32
    %48 = vector.broadcast %cst_20 : f32 to vector<8x256xf32>
    %49 = arith.select %47, %48, %46 : vector<8x256xi1>, vector<8x256xf32>
    %cst_21 = arith.constant 0x7F800000 : f32
    %50 = vector.broadcast %cst_21 : f32 to vector<8x256xf32>
    %51 = arith.cmpf oeq, %49, %50 : vector<8x256xf32>
    %cst_22 = arith.constant 3.40282347E+38 : f32
    %52 = vector.broadcast %cst_22 : f32 to vector<8x256xf32>
    %53 = arith.select %51, %52, %49 : vector<8x256xi1>, vector<8x256xf32>
    %cst_23 = arith.constant 0xFF800000 : f32
    %54 = vector.broadcast %cst_23 : f32 to vector<8x256xf32>
    %55 = arith.cmpf oeq, %53, %54 : vector<8x256xf32>
    %cst_24 = arith.constant -3.40282347E+38 : f32
    %56 = vector.broadcast %cst_24 : f32 to vector<8x256xf32>
    %57 = arith.select %55, %56, %53 : vector<8x256xi1>, vector<8x256xf32>
    %58 = arith.index_cast %c2_i32 : i32 to index
    %c0_25 = arith.constant 0 : index
    %c0_26 = arith.constant 0 : index
    %59 = vector.load %arg2[%58, %c0_25, %c0_26] : memref<16x1x256xf32, #tpu.memory_space<vmem>>, vector<1x1x256xf32>
    %60 = vector.shape_cast %59 : vector<1x1x256xf32> to vector<1x256xf32>
    %61 = vector.broadcast %60 : vector<1x256xf32> to vector<8x256xf32>
    %62 = arith.mulf %61, %57 : vector<8x256xf32>
    %63 = arith.addf %42, %62 : vector<8x256xf32>
    %64 = arith.addf %43, %60 : vector<1x256xf32>
    %c3_i32 = arith.constant 3 : i32
    %65 = arith.index_cast %c3_i32 : i32 to index
    %c0_27 = arith.constant 0 : index
    %c0_28 = arith.constant 0 : index
    %66 = vector.load %arg1[%65, %c0_27, %c0_28] : memref<16x8x256xf32, #tpu.memory_space<vmem>>, vector<1x8x256xf32>
    %67 = vector.shape_cast %66 : vector<1x8x256xf32> to vector<8x256xf32>
    %68 = arith.cmpf one, %67, %67 : vector<8x256xf32>
    %cst_29 = arith.constant 0.000000e+00 : f32
    %69 = vector.broadcast %cst_29 : f32 to vector<8x256xf32>
    %70 = arith.select %68, %69, %67 : vector<8x256xi1>, vector<8x256xf32>
    %cst_30 = arith.constant 0x7F800000 : f32
    %71 = vector.broadcast %cst_30 : f32 to vector<8x256xf32>
    %72 = arith.cmpf oeq, %70, %71 : vector<8x256xf32>
    %cst_31 = arith.constant 3.40282347E+38 : f32
    %73 = vector.broadcast %cst_31 : f32 to vector<8x256xf32>
    %74 = arith.select %72, %73, %70 : vector<8x256xi1>, vector<8x256xf32>
    %cst_32 = arith.constant 0xFF800000 : f32
    %75 = vector.broadcast %cst_32 : f32 to vector<8x256xf32>
    %76 = arith.cmpf oeq, %74, %75 : vector<8x256xf32>
    %cst_33 = arith.constant -3.40282347E+38 : f32
    %77 = vector.broadcast %cst_33 : f32 to vector<8x256xf32>
    %78 = arith.select %76, %77, %74 : vector<8x256xi1>, vector<8x256xf32>
    %79 = arith.index_cast %c3_i32 : i32 to index
    %c0_34 = arith.constant 0 : index
    %c0_35 = arith.constant 0 : index
    %80 = vector.load %arg2[%79, %c0_34, %c0_35] : memref<16x1x256xf32, #tpu.memory_space<vmem>>, vector<1x1x256xf32>
    %81 = vector.shape_cast %80 : vector<1x1x256xf32> to vector<1x256xf32>
    %82 = vector.broadcast %81 : vector<1x256xf32> to vector<8x256xf32>
    %83 = arith.mulf %82, %78 : vector<8x256xf32>
    %84 = arith.addf %63, %83 : vector<8x256xf32>
    %85 = arith.addf %64, %81 : vector<1x256xf32>
    %c4_i32 = arith.constant 4 : i32
    %86 = arith.index_cast %c4_i32 : i32 to index
    %c0_36 = arith.constant 0 : index
    %c0_37 = arith.constant 0 : index
    %87 = vector.load %arg1[%86, %c0_36, %c0_37] : memref<16x8x256xf32, #tpu.memory_space<vmem>>, vector<1x8x256xf32>
    %88 = vector.shape_cast %87 : vector<1x8x256xf32> to vector<8x256xf32>
    %89 = arith.cmpf one, %88, %88 : vector<8x256xf32>
    %cst_38 = arith.constant 0.000000e+00 : f32
    %90 = vector.broadcast %cst_38 : f32 to vector<8x256xf32>
    %91 = arith.select %89, %90, %88 : vector<8x256xi1>, vector<8x256xf32>
    %cst_39 = arith.constant 0x7F800000 : f32
    %92 = vector.broadcast %cst_39 : f32 to vector<8x256xf32>
    %93 = arith.cmpf oeq, %91, %92 : vector<8x256xf32>
    %cst_40 = arith.constant 3.40282347E+38 : f32
    %94 = vector.broadcast %cst_40 : f32 to vector<8x256xf32>
    %95 = arith.select %93, %94, %91 : vector<8x256xi1>, vector<8x256xf32>
    %cst_41 = arith.constant 0xFF800000 : f32
    %96 = vector.broadcast %cst_41 : f32 to vector<8x256xf32>
    %97 = arith.cmpf oeq, %95, %96 : vector<8x256xf32>
    %cst_42 = arith.constant -3.40282347E+38 : f32
    %98 = vector.broadcast %cst_42 : f32 to vector<8x256xf32>
    %99 = arith.select %97, %98, %95 : vector<8x256xi1>, vector<8x256xf32>
    %100 = arith.index_cast %c4_i32 : i32 to index
    %c0_43 = arith.constant 0 : index
    %c0_44 = arith.constant 0 : index
    %101 = vector.load %arg2[%100, %c0_43, %c0_44] : memref<16x1x256xf32, #tpu.memory_space<vmem>>, vector<1x1x256xf32>
    %102 = vector.shape_cast %101 : vector<1x1x256xf32> to vector<1x256xf32>
    %103 = vector.broadcast %102 : vector<1x256xf32> to vector<8x256xf32>
    %104 = arith.mulf %103, %99 : vector<8x256xf32>
    %105 = arith.addf %84, %104 : vector<8x256xf32>
    %106 = arith.addf %85, %102 : vector<1x256xf32>
    %c5_i32 = arith.constant 5 : i32
    %107 = arith.index_cast %c5_i32 : i32 to index
    %c0_45 = arith.constant 0 : index
    %c0_46 = arith.constant 0 : index
    %108 = vector.load %arg1[%107, %c0_45, %c0_46] : memref<16x8x256xf32, #tpu.memory_space<vmem>>, vector<1x8x256xf32>
    %109 = vector.shape_cast %108 : vector<1x8x256xf32> to vector<8x256xf32>
    %110 = arith.cmpf one, %109, %109 : vector<8x256xf32>
    %cst_47 = arith.constant 0.000000e+00 : f32
    %111 = vector.broadcast %cst_47 : f32 to vector<8x256xf32>
    %112 = arith.select %110, %111, %109 : vector<8x256xi1>, vector<8x256xf32>
    %cst_48 = arith.constant 0x7F800000 : f32
    %113 = vector.broadcast %cst_48 : f32 to vector<8x256xf32>
    %114 = arith.cmpf oeq, %112, %113 : vector<8x256xf32>
    %cst_49 = arith.constant 3.40282347E+38 : f32
    %115 = vector.broadcast %cst_49 : f32 to vector<8x256xf32>
    %116 = arith.select %114, %115, %112 : vector<8x256xi1>, vector<8x256xf32>
    %cst_50 = arith.constant 0xFF800000 : f32
    %117 = vector.broadcast %cst_50 : f32 to vector<8x256xf32>
    %118 = arith.cmpf oeq, %116, %117 : vector<8x256xf32>
    %cst_51 = arith.constant -3.40282347E+38 : f32
    %119 = vector.broadcast %cst_51 : f32 to vector<8x256xf32>
    %120 = arith.select %118, %119, %116 : vector<8x256xi1>, vector<8x256xf32>
    %121 = arith.index_cast %c5_i32 : i32 to index
    %c0_52 = arith.constant 0 : index
    %c0_53 = arith.constant 0 : index
    %122 = vector.load %arg2[%121, %c0_52, %c0_53] : memref<16x1x256xf32, #tpu.memory_space<vmem>>, vector<1x1x256xf32>
    %123 = vector.shape_cast %122 : vector<1x1x256xf32> to vector<1x256xf32>
    %124 = vector.broadcast %123 : vector<1x256xf32> to vector<8x256xf32>
    %125 = arith.mulf %124, %120 : vector<8x256xf32>
    %126 = arith.addf %105, %125 : vector<8x256xf32>
    %127 = arith.addf %106, %123 : vector<1x256xf32>
    %c6_i32 = arith.constant 6 : i32
    %128 = arith.index_cast %c6_i32 : i32 to index
    %c0_54 = arith.constant 0 : index
    %c0_55 = arith.constant 0 : index
    %129 = vector.load %arg1[%128, %c0_54, %c0_55] : memref<16x8x256xf32, #tpu.memory_space<vmem>>, vector<1x8x256xf32>
    %130 = vector.shape_cast %129 : vector<1x8x256xf32> to vector<8x256xf32>
    %131 = arith.cmpf one, %130, %130 : vector<8x256xf32>
    %cst_56 = arith.constant 0.000000e+00 : f32
    %132 = vector.broadcast %cst_56 : f32 to vector<8x256xf32>
    %133 = arith.select %131, %132, %130 : vector<8x256xi1>, vector<8x256xf32>
    %cst_57 = arith.constant 0x7F800000 : f32
    %134 = vector.broadcast %cst_57 : f32 to vector<8x256xf32>
    %135 = arith.cmpf oeq, %133, %134 : vector<8x256xf32>
    %cst_58 = arith.constant 3.40282347E+38 : f32
    %136 = vector.broadcast %cst_58 : f32 to vector<8x256xf32>
    %137 = arith.select %135, %136, %133 : vector<8x256xi1>, vector<8x256xf32>
    %cst_59 = arith.constant 0xFF800000 : f32
    %138 = vector.broadcast %cst_59 : f32 to vector<8x256xf32>
    %139 = arith.cmpf oeq, %137, %138 : vector<8x256xf32>
    %cst_60 = arith.constant -3.40282347E+38 : f32
    %140 = vector.broadcast %cst_60 : f32 to vector<8x256xf32>
    %141 = arith.select %139, %140, %137 : vector<8x256xi1>, vector<8x256xf32>
    %142 = arith.index_cast %c6_i32 : i32 to index
    %c0_61 = arith.constant 0 : index
    %c0_62 = arith.constant 0 : index
    %143 = vector.load %arg2[%142, %c0_61, %c0_62] : memref<16x1x256xf32, #tpu.memory_space<vmem>>, vector<1x1x256xf32>
    %144 = vector.shape_cast %143 : vector<1x1x256xf32> to vector<1x256xf32>
    %145 = vector.broadcast %144 : vector<1x256xf32> to vector<8x256xf32>
    %146 = arith.mulf %145, %141 : vector<8x256xf32>
    %147 = arith.addf %126, %146 : vector<8x256xf32>
    %148 = arith.addf %127, %144 : vector<1x256xf32>
    %c7_i32 = arith.constant 7 : i32
    %149 = arith.index_cast %c7_i32 : i32 to index
    %c0_63 = arith.constant 0 : index
    %c0_64 = arith.constant 0 : index
    %150 = vector.load %arg1[%149, %c0_63, %c0_64] : memref<16x8x256xf32, #tpu.memory_space<vmem>>, vector<1x8x256xf32>
    %151 = vector.shape_cast %150 : vector<1x8x256xf32> to vector<8x256xf32>
    %152 = arith.cmpf one, %151, %151 : vector<8x256xf32>
    %cst_65 = arith.constant 0.000000e+00 : f32
    %153 = vector.broadcast %cst_65 : f32 to vector<8x256xf32>
    %154 = arith.select %152, %153, %151 : vector<8x256xi1>, vector<8x256xf32>
    %cst_66 = arith.constant 0x7F800000 : f32
    %155 = vector.broadcast %cst_66 : f32 to vector<8x256xf32>
    %156 = arith.cmpf oeq, %154, %155 : vector<8x256xf32>
    %cst_67 = arith.constant 3.40282347E+38 : f32
    %157 = vector.broadcast %cst_67 : f32 to vector<8x256xf32>
    %158 = arith.select %156, %157, %154 : vector<8x256xi1>, vector<8x256xf32>
    %cst_68 = arith.constant 0xFF800000 : f32
    %159 = vector.broadcast %cst_68 : f32 to vector<8x256xf32>
    %160 = arith.cmpf oeq, %158, %159 : vector<8x256xf32>
    %cst_69 = arith.constant -3.40282347E+38 : f32
    %161 = vector.broadcast %cst_69 : f32 to vector<8x256xf32>
    %162 = arith.select %160, %161, %158 : vector<8x256xi1>, vector<8x256xf32>
    %163 = arith.index_cast %c7_i32 : i32 to index
    %c0_70 = arith.constant 0 : index
    %c0_71 = arith.constant 0 : index
    %164 = vector.load %arg2[%163, %c0_70, %c0_71] : memref<16x1x256xf32, #tpu.memory_space<vmem>>, vector<1x1x256xf32>
    %165 = vector.shape_cast %164 : vector<1x1x256xf32> to vector<1x256xf32>
    %166 = vector.broadcast %165 : vector<1x256xf32> to vector<8x256xf32>
    %167 = arith.mulf %166, %162 : vector<8x256xf32>
    %168 = arith.addf %147, %167 : vector<8x256xf32>
    %169 = arith.addf %148, %165 : vector<1x256xf32>
    %c8_i32 = arith.constant 8 : i32
    %170 = arith.index_cast %c8_i32 : i32 to index
    %c0_72 = arith.constant 0 : index
    %c0_73 = arith.constant 0 : index
    %171 = vector.load %arg1[%170, %c0_72, %c0_73] : memref<16x8x256xf32, #tpu.memory_space<vmem>>, vector<1x8x256xf32>
    %172 = vector.shape_cast %171 : vector<1x8x256xf32> to vector<8x256xf32>
    %173 = arith.cmpf one, %172, %172 : vector<8x256xf32>
    %cst_74 = arith.constant 0.000000e+00 : f32
    %174 = vector.broadcast %cst_74 : f32 to vector<8x256xf32>
    %175 = arith.select %173, %174, %172 : vector<8x256xi1>, vector<8x256xf32>
    %cst_75 = arith.constant 0x7F800000 : f32
    %176 = vector.broadcast %cst_75 : f32 to vector<8x256xf32>
    %177 = arith.cmpf oeq, %175, %176 : vector<8x256xf32>
    %cst_76 = arith.constant 3.40282347E+38 : f32
    %178 = vector.broadcast %cst_76 : f32 to vector<8x256xf32>
    %179 = arith.select %177, %178, %175 : vector<8x256xi1>, vector<8x256xf32>
    %cst_77 = arith.constant 0xFF800000 : f32
    %180 = vector.broadcast %cst_77 : f32 to vector<8x256xf32>
    %181 = arith.cmpf oeq, %179, %180 : vector<8x256xf32>
    %cst_78 = arith.constant -3.40282347E+38 : f32
    %182 = vector.broadcast %cst_78 : f32 to vector<8x256xf32>
    %183 = arith.select %181, %182, %179 : vector<8x256xi1>, vector<8x256xf32>
    %184 = arith.index_cast %c8_i32 : i32 to index
    %c0_79 = arith.constant 0 : index
    %c0_80 = arith.constant 0 : index
    %185 = vector.load %arg2[%184, %c0_79, %c0_80] : memref<16x1x256xf32, #tpu.memory_space<vmem>>, vector<1x1x256xf32>
    %186 = vector.shape_cast %185 : vector<1x1x256xf32> to vector<1x256xf32>
    %187 = vector.broadcast %186 : vector<1x256xf32> to vector<8x256xf32>
    %188 = arith.mulf %187, %183 : vector<8x256xf32>
    %189 = arith.addf %168, %188 : vector<8x256xf32>
    %190 = arith.addf %169, %186 : vector<1x256xf32>
    %c9_i32 = arith.constant 9 : i32
    %191 = arith.index_cast %c9_i32 : i32 to index
    %c0_81 = arith.constant 0 : index
    %c0_82 = arith.constant 0 : index
    %192 = vector.load %arg1[%191, %c0_81, %c0_82] : memref<16x8x256xf32, #tpu.memory_space<vmem>>, vector<1x8x256xf32>
    %193 = vector.shape_cast %192 : vector<1x8x256xf32> to vector<8x256xf32>
    %194 = arith.cmpf one, %193, %193 : vector<8x256xf32>
    %cst_83 = arith.constant 0.000000e+00 : f32
    %195 = vector.broadcast %cst_83 : f32 to vector<8x256xf32>
    %196 = arith.select %194, %195, %193 : vector<8x256xi1>, vector<8x256xf32>
    %cst_84 = arith.constant 0x7F800000 : f32
    %197 = vector.broadcast %cst_84 : f32 to vector<8x256xf32>
    %198 = arith.cmpf oeq, %196, %197 : vector<8x256xf32>
    %cst_85 = arith.constant 3.40282347E+38 : f32
    %199 = vector.broadcast %cst_85 : f32 to vector<8x256xf32>
    %200 = arith.select %198, %199, %196 : vector<8x256xi1>, vector<8x256xf32>
    %cst_86 = arith.constant 0xFF800000 : f32
    %201 = vector.broadcast %cst_86 : f32 to vector<8x256xf32>
    %202 = arith.cmpf oeq, %200, %201 : vector<8x256xf32>
    %cst_87 = arith.constant -3.40282347E+38 : f32
    %203 = vector.broadcast %cst_87 : f32 to vector<8x256xf32>
    %204 = arith.select %202, %203, %200 : vector<8x256xi1>, vector<8x256xf32>
    %205 = arith.index_cast %c9_i32 : i32 to index
    %c0_88 = arith.constant 0 : index
    %c0_89 = arith.constant 0 : index
    %206 = vector.load %arg2[%205, %c0_88, %c0_89] : memref<16x1x256xf32, #tpu.memory_space<vmem>>, vector<1x1x256xf32>
    %207 = vector.shape_cast %206 : vector<1x1x256xf32> to vector<1x256xf32>
    %208 = vector.broadcast %207 : vector<1x256xf32> to vector<8x256xf32>
    %209 = arith.mulf %208, %204 : vector<8x256xf32>
    %210 = arith.addf %189, %209 : vector<8x256xf32>
    %211 = arith.addf %190, %207 : vector<1x256xf32>
    %c10_i32 = arith.constant 10 : i32
    %212 = arith.index_cast %c10_i32 : i32 to index
    %c0_90 = arith.constant 0 : index
    %c0_91 = arith.constant 0 : index
    %213 = vector.load %arg1[%212, %c0_90, %c0_91] : memref<16x8x256xf32, #tpu.memory_space<vmem>>, vector<1x8x256xf32>
    %214 = vector.shape_cast %213 : vector<1x8x256xf32> to vector<8x256xf32>
    %215 = arith.cmpf one, %214, %214 : vector<8x256xf32>
    %cst_92 = arith.constant 0.000000e+00 : f32
    %216 = vector.broadcast %cst_92 : f32 to vector<8x256xf32>
    %217 = arith.select %215, %216, %214 : vector<8x256xi1>, vector<8x256xf32>
    %cst_93 = arith.constant 0x7F800000 : f32
    %218 = vector.broadcast %cst_93 : f32 to vector<8x256xf32>
    %219 = arith.cmpf oeq, %217, %218 : vector<8x256xf32>
    %cst_94 = arith.constant 3.40282347E+38 : f32
    %220 = vector.broadcast %cst_94 : f32 to vector<8x256xf32>
    %221 = arith.select %219, %220, %217 : vector<8x256xi1>, vector<8x256xf32>
    %cst_95 = arith.constant 0xFF800000 : f32
    %222 = vector.broadcast %cst_95 : f32 to vector<8x256xf32>
    %223 = arith.cmpf oeq, %221, %222 : vector<8x256xf32>
    %cst_96 = arith.constant -3.40282347E+38 : f32
    %224 = vector.broadcast %cst_96 : f32 to vector<8x256xf32>
    %225 = arith.select %223, %224, %221 : vector<8x256xi1>, vector<8x256xf32>
    %226 = arith.index_cast %c10_i32 : i32 to index
    %c0_97 = arith.constant 0 : index
    %c0_98 = arith.constant 0 : index
    %227 = vector.load %arg2[%226, %c0_97, %c0_98] : memref<16x1x256xf32, #tpu.memory_space<vmem>>, vector<1x1x256xf32>
    %228 = vector.shape_cast %227 : vector<1x1x256xf32> to vector<1x256xf32>
    %229 = vector.broadcast %228 : vector<1x256xf32> to vector<8x256xf32>
    %230 = arith.mulf %229, %225 : vector<8x256xf32>
    %231 = arith.addf %210, %230 : vector<8x256xf32>
    %232 = arith.addf %211, %228 : vector<1x256xf32>
    %c11_i32 = arith.constant 11 : i32
    %233 = arith.index_cast %c11_i32 : i32 to index
    %c0_99 = arith.constant 0 : index
    %c0_100 = arith.constant 0 : index
    %234 = vector.load %arg1[%233, %c0_99, %c0_100] : memref<16x8x256xf32, #tpu.memory_space<vmem>>, vector<1x8x256xf32>
    %235 = vector.shape_cast %234 : vector<1x8x256xf32> to vector<8x256xf32>
    %236 = arith.cmpf one, %235, %235 : vector<8x256xf32>
    %cst_101 = arith.constant 0.000000e+00 : f32
    %237 = vector.broadcast %cst_101 : f32 to vector<8x256xf32>
    %238 = arith.select %236, %237, %235 : vector<8x256xi1>, vector<8x256xf32>
    %cst_102 = arith.constant 0x7F800000 : f32
    %239 = vector.broadcast %cst_102 : f32 to vector<8x256xf32>
    %240 = arith.cmpf oeq, %238, %239 : vector<8x256xf32>
    %cst_103 = arith.constant 3.40282347E+38 : f32
    %241 = vector.broadcast %cst_103 : f32 to vector<8x256xf32>
    %242 = arith.select %240, %241, %238 : vector<8x256xi1>, vector<8x256xf32>
    %cst_104 = arith.constant 0xFF800000 : f32
    %243 = vector.broadcast %cst_104 : f32 to vector<8x256xf32>
    %244 = arith.cmpf oeq, %242, %243 : vector<8x256xf32>
    %cst_105 = arith.constant -3.40282347E+38 : f32
    %245 = vector.broadcast %cst_105 : f32 to vector<8x256xf32>
    %246 = arith.select %244, %245, %242 : vector<8x256xi1>, vector<8x256xf32>
    %247 = arith.index_cast %c11_i32 : i32 to index
    %c0_106 = arith.constant 0 : index
    %c0_107 = arith.constant 0 : index
    %248 = vector.load %arg2[%247, %c0_106, %c0_107] : memref<16x1x256xf32, #tpu.memory_space<vmem>>, vector<1x1x256xf32>
    %249 = vector.shape_cast %248 : vector<1x1x256xf32> to vector<1x256xf32>
    %250 = vector.broadcast %249 : vector<1x256xf32> to vector<8x256xf32>
    %251 = arith.mulf %250, %246 : vector<8x256xf32>
    %252 = arith.addf %231, %251 : vector<8x256xf32>
    %253 = arith.addf %232, %249 : vector<1x256xf32>
    %c12_i32 = arith.constant 12 : i32
    %254 = arith.index_cast %c12_i32 : i32 to index
    %c0_108 = arith.constant 0 : index
    %c0_109 = arith.constant 0 : index
    %255 = vector.load %arg1[%254, %c0_108, %c0_109] : memref<16x8x256xf32, #tpu.memory_space<vmem>>, vector<1x8x256xf32>
    %256 = vector.shape_cast %255 : vector<1x8x256xf32> to vector<8x256xf32>
    %257 = arith.cmpf one, %256, %256 : vector<8x256xf32>
    %cst_110 = arith.constant 0.000000e+00 : f32
    %258 = vector.broadcast %cst_110 : f32 to vector<8x256xf32>
    %259 = arith.select %257, %258, %256 : vector<8x256xi1>, vector<8x256xf32>
    %cst_111 = arith.constant 0x7F800000 : f32
    %260 = vector.broadcast %cst_111 : f32 to vector<8x256xf32>
    %261 = arith.cmpf oeq, %259, %260 : vector<8x256xf32>
    %cst_112 = arith.constant 3.40282347E+38 : f32
    %262 = vector.broadcast %cst_112 : f32 to vector<8x256xf32>
    %263 = arith.select %261, %262, %259 : vector<8x256xi1>, vector<8x256xf32>
    %cst_113 = arith.constant 0xFF800000 : f32
    %264 = vector.broadcast %cst_113 : f32 to vector<8x256xf32>
    %265 = arith.cmpf oeq, %263, %264 : vector<8x256xf32>
    %cst_114 = arith.constant -3.40282347E+38 : f32
    %266 = vector.broadcast %cst_114 : f32 to vector<8x256xf32>
    %267 = arith.select %265, %266, %263 : vector<8x256xi1>, vector<8x256xf32>
    %268 = arith.index_cast %c12_i32 : i32 to index
    %c0_115 = arith.constant 0 : index
    %c0_116 = arith.constant 0 : index
    %269 = vector.load %arg2[%268, %c0_115, %c0_116] : memref<16x1x256xf32, #tpu.memory_space<vmem>>, vector<1x1x256xf32>
    %270 = vector.shape_cast %269 : vector<1x1x256xf32> to vector<1x256xf32>
    %271 = vector.broadcast %270 : vector<1x256xf32> to vector<8x256xf32>
    %272 = arith.mulf %271, %267 : vector<8x256xf32>
    %273 = arith.addf %252, %272 : vector<8x256xf32>
    %274 = arith.addf %253, %270 : vector<1x256xf32>
    %c13_i32 = arith.constant 13 : i32
    %275 = arith.index_cast %c13_i32 : i32 to index
    %c0_117 = arith.constant 0 : index
    %c0_118 = arith.constant 0 : index
    %276 = vector.load %arg1[%275, %c0_117, %c0_118] : memref<16x8x256xf32, #tpu.memory_space<vmem>>, vector<1x8x256xf32>
    %277 = vector.shape_cast %276 : vector<1x8x256xf32> to vector<8x256xf32>
    %278 = arith.cmpf one, %277, %277 : vector<8x256xf32>
    %cst_119 = arith.constant 0.000000e+00 : f32
    %279 = vector.broadcast %cst_119 : f32 to vector<8x256xf32>
    %280 = arith.select %278, %279, %277 : vector<8x256xi1>, vector<8x256xf32>
    %cst_120 = arith.constant 0x7F800000 : f32
    %281 = vector.broadcast %cst_120 : f32 to vector<8x256xf32>
    %282 = arith.cmpf oeq, %280, %281 : vector<8x256xf32>
    %cst_121 = arith.constant 3.40282347E+38 : f32
    %283 = vector.broadcast %cst_121 : f32 to vector<8x256xf32>
    %284 = arith.select %282, %283, %280 : vector<8x256xi1>, vector<8x256xf32>
    %cst_122 = arith.constant 0xFF800000 : f32
    %285 = vector.broadcast %cst_122 : f32 to vector<8x256xf32>
    %286 = arith.cmpf oeq, %284, %285 : vector<8x256xf32>
    %cst_123 = arith.constant -3.40282347E+38 : f32
    %287 = vector.broadcast %cst_123 : f32 to vector<8x256xf32>
    %288 = arith.select %286, %287, %284 : vector<8x256xi1>, vector<8x256xf32>
    %289 = arith.index_cast %c13_i32 : i32 to index
    %c0_124 = arith.constant 0 : index
    %c0_125 = arith.constant 0 : index
    %290 = vector.load %arg2[%289, %c0_124, %c0_125] : memref<16x1x256xf32, #tpu.memory_space<vmem>>, vector<1x1x256xf32>
    %291 = vector.shape_cast %290 : vector<1x1x256xf32> to vector<1x256xf32>
    %292 = vector.broadcast %291 : vector<1x256xf32> to vector<8x256xf32>
    %293 = arith.mulf %292, %288 : vector<8x256xf32>
    %294 = arith.addf %273, %293 : vector<8x256xf32>
    %295 = arith.addf %274, %291 : vector<1x256xf32>
    %c14_i32 = arith.constant 14 : i32
    %296 = arith.index_cast %c14_i32 : i32 to index
    %c0_126 = arith.constant 0 : index
    %c0_127 = arith.constant 0 : index
    %297 = vector.load %arg1[%296, %c0_126, %c0_127] : memref<16x8x256xf32, #tpu.memory_space<vmem>>, vector<1x8x256xf32>
    %298 = vector.shape_cast %297 : vector<1x8x256xf32> to vector<8x256xf32>
    %299 = arith.cmpf one, %298, %298 : vector<8x256xf32>
    %cst_128 = arith.constant 0.000000e+00 : f32
    %300 = vector.broadcast %cst_128 : f32 to vector<8x256xf32>
    %301 = arith.select %299, %300, %298 : vector<8x256xi1>, vector<8x256xf32>
    %cst_129 = arith.constant 0x7F800000 : f32
    %302 = vector.broadcast %cst_129 : f32 to vector<8x256xf32>
    %303 = arith.cmpf oeq, %301, %302 : vector<8x256xf32>
    %cst_130 = arith.constant 3.40282347E+38 : f32
    %304 = vector.broadcast %cst_130 : f32 to vector<8x256xf32>
    %305 = arith.select %303, %304, %301 : vector<8x256xi1>, vector<8x256xf32>
    %cst_131 = arith.constant 0xFF800000 : f32
    %306 = vector.broadcast %cst_131 : f32 to vector<8x256xf32>
    %307 = arith.cmpf oeq, %305, %306 : vector<8x256xf32>
    %cst_132 = arith.constant -3.40282347E+38 : f32
    %308 = vector.broadcast %cst_132 : f32 to vector<8x256xf32>
    %309 = arith.select %307, %308, %305 : vector<8x256xi1>, vector<8x256xf32>
    %310 = arith.index_cast %c14_i32 : i32 to index
    %c0_133 = arith.constant 0 : index
    %c0_134 = arith.constant 0 : index
    %311 = vector.load %arg2[%310, %c0_133, %c0_134] : memref<16x1x256xf32, #tpu.memory_space<vmem>>, vector<1x1x256xf32>
    %312 = vector.shape_cast %311 : vector<1x1x256xf32> to vector<1x256xf32>
    %313 = vector.broadcast %312 : vector<1x256xf32> to vector<8x256xf32>
    %314 = arith.mulf %313, %309 : vector<8x256xf32>
    %315 = arith.addf %294, %314 : vector<8x256xf32>
    %316 = arith.addf %295, %312 : vector<1x256xf32>
    %c15_i32 = arith.constant 15 : i32
    %317 = arith.index_cast %c15_i32 : i32 to index
    %c0_135 = arith.constant 0 : index
    %c0_136 = arith.constant 0 : index
    %318 = vector.load %arg1[%317, %c0_135, %c0_136] : memref<16x8x256xf32, #tpu.memory_space<vmem>>, vector<1x8x256xf32>
    %319 = vector.shape_cast %318 : vector<1x8x256xf32> to vector<8x256xf32>
    %320 = arith.cmpf one, %319, %319 : vector<8x256xf32>
    %cst_137 = arith.constant 0.000000e+00 : f32
    %321 = vector.broadcast %cst_137 : f32 to vector<8x256xf32>
    %322 = arith.select %320, %321, %319 : vector<8x256xi1>, vector<8x256xf32>
    %cst_138 = arith.constant 0x7F800000 : f32
    %323 = vector.broadcast %cst_138 : f32 to vector<8x256xf32>
    %324 = arith.cmpf oeq, %322, %323 : vector<8x256xf32>
    %cst_139 = arith.constant 3.40282347E+38 : f32
    %325 = vector.broadcast %cst_139 : f32 to vector<8x256xf32>
    %326 = arith.select %324, %325, %322 : vector<8x256xi1>, vector<8x256xf32>
    %cst_140 = arith.constant 0xFF800000 : f32
    %327 = vector.broadcast %cst_140 : f32 to vector<8x256xf32>
    %328 = arith.cmpf oeq, %326, %327 : vector<8x256xf32>
    %cst_141 = arith.constant -3.40282347E+38 : f32
    %329 = vector.broadcast %cst_141 : f32 to vector<8x256xf32>
    %330 = arith.select %328, %329, %326 : vector<8x256xi1>, vector<8x256xf32>
    %331 = arith.index_cast %c15_i32 : i32 to index
    %c0_142 = arith.constant 0 : index
    %c0_143 = arith.constant 0 : index
    %332 = vector.load %arg2[%331, %c0_142, %c0_143] : memref<16x1x256xf32, #tpu.memory_space<vmem>>, vector<1x1x256xf32>
    %333 = vector.shape_cast %332 : vector<1x1x256xf32> to vector<1x256xf32>
    %334 = vector.broadcast %333 : vector<1x256xf32> to vector<8x256xf32>
    %335 = arith.mulf %334, %330 : vector<8x256xf32>
    %336 = arith.addf %315, %335 : vector<8x256xf32>
    %337 = arith.addf %316, %333 : vector<1x256xf32>
    %c16_i32 = arith.constant 16 : i32
    %c0_144 = arith.constant 0 : index
    %c0_145 = arith.constant 0 : index
    %338 = vector.load %arg4[%c0_144, %c0_145] : memref<8x256xf32, #tpu.memory_space<vmem>>, vector<8x256xf32>
    tpu.vector_store %arg4[%c0_144, %c0_145], %336 {strides = array<i32>} : memref<8x256xf32, #tpu.memory_space<vmem>>, vector<8x256xf32>,
    %339 = vector.extract_strided_slice %336 {offsets = [0, 0], sizes = [3, 256], strides = [1, 1]} : vector<8x256xf32> to vector<3x256xf32>
    %c0_146 = arith.constant 0 : index
    %c0_147 = arith.constant 0 : index
    %340 = vector.load %arg3[%c0_146, %c0_147] : memref<3x256xf32, #tpu.memory_space<vmem>>, vector<3x256xf32>
    %cst_148 = arith.constant 1.000000e+00 : f32
    %341 = vector.broadcast %cst_148 : f32 to vector<1x256xf32>
    %342 = arith.subf %341, %337 : vector<1x256xf32>
    %343 = vector.broadcast %342 : vector<1x256xf32> to vector<3x256xf32>
    %344 = arith.mulf %340, %343 : vector<3x256xf32>
    %345 = arith.addf %339, %344 : vector<3x256xf32>
    %c0_149 = arith.constant 0 : index
    %c0_150 = arith.constant 0 : index
    %346 = vector.load %arg4[%c0_149, %c0_150] : memref<8x256xf32, #tpu.memory_space<vmem>>, vector<3x256xf32>
    tpu.vector_store %arg4[%c0_149, %c0_150], %345 {strides = array<i32>} : memref<8x256xf32, #tpu.memory_space<vmem>>, vector<3x256xf32>,
    return
  }
  func.func @transform_0(%arg0: i32) -> (i32, i32, i32) {
    %c0_i32 = arith.constant 0 : i32
    %c0_i32_0 = arith.constant 0 : i32
    %c0_i32_1 = arith.constant 0 : i32
    return %c0_i32, %c0_i32_0, %arg0 : i32, i32, i32
  }
  func.func @transform_1(%arg0: i32) -> (i32, i32, i32) {
    %c0_i32 = arith.constant 0 : i32
    %c0_i32_0 = arith.constant 0 : i32
    %c0_i32_1 = arith.constant 0 : i32
    return %c0_i32, %c0_i32_0, %arg0 : i32, i32, i32
  }
  func.func @transform_2(%arg0: i32) -> (i32, i32) {
    %c0_i32 = arith.constant 0 : i32
    %c0_i32_0 = arith.constant 0 : i32
    return %c0_i32, %arg0 : i32, i32
  }
  func.func @transform_3(%arg0: i32) -> (i32, i32) {
    %c0_i32 = arith.constant 0 : i32
    %c0_i32_0 = arith.constant 0 : i32
    return %c0_i32, %arg0 : i32, i32
  }
}

</mosaic_0001>

<llo_original>
// kernel: tpu_custom_call.1
$region0: #{tpu_custom_call.1}
  #allocation0 [shape = 'u32[]', space=smem, size = 0x4, offset = 0x4, fixed_abs, tag = 'smem constant byte address 0x4 - core index']
  #allocation1 [shape = 'u32[144,128]{1,0:T(1,128)}', space=vmem, size = 0x12000, scoped, tag = 'internal scratch']
  %s0 = inlined_call_operand.hbm [shape: f32[16,8,1024], index: 0, kind: input, shape index: {}]
  %s1 = inlined_call_operand.hbm [shape: f32[16,1,1024], index: 1, kind: input, shape index: {}]
  %s2 = inlined_call_operand.hbm [shape: f32[3,1024], index: 2, kind: input, shape index: {}]
  %s3 = inlined_call_operand.hbm [shape: f32[8,1024], index: 3, kind: output, shape index: {}]
  %s4 = sld [smem:[#allocation0]]
  $region57: #{tpu_custom_call.1} parent=0
    _
  %s6 = ssub.s32 1, %s4
  %s7 = scalar_select 0, %s6, %s4
  $region1: #{tpu_custom_call.1} parent=0
    #allocation2 [shape = 'u8[262144]{0}', space=vmem, size = 0x40000, scoped, tag = 'input window, operand 0']
    #allocation3 [shape = 's32[2]{0}', space=sflag, size = 0x8, scoped, tag = 'scoped memory for tpu_custom_call.1']
    #allocation4 [shape = 's32[2]{0}', space=sflag, size = 0x8, scoped, tag = 'scoped memory for tpu_custom_call.1']
    #allocation5 [shape = 'u8[32768]{0}', space=vmem, size = 0x8000, scoped, tag = 'input window, operand 1']
    #allocation6 [shape = 's32[2]{0}', space=sflag, size = 0x8, scoped, tag = 'scoped memory for tpu_custom_call.1']
    #allocation7 [shape = 'u8[8192]{0}', space=vmem, size = 0x2000, scoped, tag = 'input window, operand 2']
    #allocation8 [shape = 'u8[16384]{0}', space=vmem, size = 0x4000, scoped, tag = 'output window, operand 0']
    %8 = vsyncpa [#allocation3], 0
    %s9 = scalar_lea.sflag [#allocation3], 1
    %10 = vsyncpa %s9, 0
    %11 = vsyncpa [#allocation6], 0
    %s12 = scalar_lea.sflag [#allocation6], 1
    %13 = vsyncpa %s12, 0
    %14 = vsyncpa [#allocation4], 0
    %s15 = scalar_lea.sflag [#allocation4], 1
    %16 = vsyncpa %s15, 0
    loop: start=0, step=1, limit=6
    $region2: #{tpu_custom_call.1} parent=1 // loop_pre_header
      _
    $region3: #{tpu_custom_call.1} parent=1 // loop_header
      %s18 = sphi 0, %s22
      %p19 = scmp.ge.s32.totalorder %s18, 6
      %s28 = sphi 0, %s30
      %s31 = sphi 0, %s28
      %s32 = sphi 0, %s31
      %s48 = sphi 0, %s32
      %s54 = sphi 0, %s56
      %s57 = sphi 0, %s54
      %s58 = sphi 0, %s57
      %s74 = sphi 0, %s58
      %s80 = sphi 0, %s82
      %s83 = sphi 0, %s80
      %s84 = sphi 0, %s83
      %s100 = sphi 0, %s84
      %s106 = sphi 0, %s108
      %s109 = sphi 0, %s106
      %s110 = sphi 0, %s109
      %s126 = sphi 0, %s110
    $region4: #{tpu_custom_call.1} parent=1 // loop_header_branch
      %21 = sbr.rel (%p19) target = $region8
    $region5: #{tpu_custom_call.1} parent=1 // loop_body
      %s23 = ssub.s32 %s18, 1
      %s24 = ssub.s32 %s18, 2
      %s25 = sadd.s32 %s18, 1
      %s26 = ssub.s32 %s18, %s25
      %p27 = scmp.eq.s32.totalorder %s26, 0
      %s29 = sadd.s32 %s28, 1
      %s30 = scalar_select %p27, %s28, %s29
      %p33 = pneg %p27
      %p34 = scmp.eq.s32.totalorder %s18, 3
      %p35 = por %p33, %p34
      %p36 = scmp.ne.s32.totalorder %s28, %s31
      %p37 = scmp.eq.s32.totalorder %s18, 0
      %p38 = por %p36, %p37
      %p39 = scmp.ne.s32.totalorder %s28, %s31
      %p40 = scmp.eq.s32.totalorder %s23, 3
      %p41 = por %p39, %p40
      %p42 = scmp.ne.s32.totalorder %s31, %s32
      %p43 = scmp.eq.s32.totalorder %s23, 0
      %p44 = por %p42, %p43
      %p45 = scmp.ne.s32.totalorder %s31, %s32
      %p46 = scmp.eq.s32.totalorder %s24, 3
      %p47 = por %p45, %p46
      %p49 = scmp.ne.s32.totalorder %s32, %s48
      %p50 = scmp.eq.s32.totalorder %s24, 0
      %p51 = por %p49, %p50
      %s52 = ssub.s32 %s18, %s25
      %p53 = scmp.eq.s32.totalorder %s52, 0
      %s55 = sadd.s32 %s54, 1
      %s56 = scalar_select %p53, %s54, %s55
      %p59 = pneg %p53
      %p60 = scmp.eq.s32.totalorder %s18, 3
      %p61 = por %p59, %p60
      %p62 = scmp.ne.s32.totalorder %s54, %s57
      %p63 = scmp.eq.s32.totalorder %s18, 0
      %p64 = por %p62, %p63
      %p65 = scmp.ne.s32.totalorder %s54, %s57
      %p66 = scmp.eq.s32.totalorder %s23, 3
      %p67 = por %p65, %p66
      %p68 = scmp.ne.s32.totalorder %s57, %s58
      %p69 = scmp.eq.s32.totalorder %s23, 0
      %p70 = por %p68, %p69
      %p71 = scmp.ne.s32.totalorder %s57, %s58
      %p72 = scmp.eq.s32.totalorder %s24, 3
      %p73 = por %p71, %p72
      %p75 = scmp.ne.s32.totalorder %s58, %s74
      %p76 = scmp.eq.s32.totalorder %s24, 0
      %p77 = por %p75, %p76
      %s78 = ssub.s32 %s18, %s25
      %p79 = scmp.eq.s32.totalorder %s78, 0
      %s81 = sadd.s32 %s80, 1
      %s82 = scalar_select %p79, %s80, %s81
      %p85 = pneg %p79
      %p86 = scmp.eq.s32.totalorder %s18, 3
      %p87 = por %p85, %p86
      %p88 = scmp.ne.s32.totalorder %s80, %s83
      %p89 = scmp.eq.s32.totalorder %s18, 0
      %p90 = por %p88, %p89
      %p91 = scmp.ne.s32.totalorder %s80, %s83
      %p92 = scmp.eq.s32.totalorder %s23, 3
      %p93 = por %p91, %p92
      %p94 = scmp.ne.s32.totalorder %s83, %s84
      %p95 = scmp.eq.s32.totalorder %s23, 0
      %p96 = por %p94, %p95
      %p97 = scmp.ne.s32.totalorder %s83, %s84
      %p98 = scmp.eq.s32.totalorder %s24, 3
      %p99 = por %p97, %p98
      %p101 = scmp.ne.s32.totalorder %s84, %s100
      %p102 = scmp.eq.s32.totalorder %s24, 0
      %p103 = por %p101, %p102
      %s104 = ssub.s32 %s18, %s25
      %p105 = scmp.eq.s32.totalorder %s104, 0
      %s107 = sadd.s32 %s106, 1
      %s108 = scalar_select %p105, %s106, %s107
      %p111 = pneg %p105
      %p112 = scmp.eq.s32.totalorder %s18, 3
      %p113 = por %p111, %p112
      %p114 = scmp.ne.s32.totalorder %s106, %s109
      %p115 = scmp.eq.s32.totalorder %s18, 0
      %p116 = por %p114, %p115
      %p117 = scmp.ne.s32.totalorder %s106, %s109
      %p118 = scmp.eq.s32.totalorder %s23, 3
      %p119 = por %p117, %p118
      %p120 = scmp.ne.s32.totalorder %s109, %s110
      %p121 = scmp.eq.s32.totalorder %s23, 0
      %p122 = por %p120, %p121
      %p123 = scmp.ne.s32.totalorder %s109, %s110
      %p124 = scmp.eq.s32.totalorder %s24, 3
      %p125 = por %p123, %p124
      %p127 = scmp.ne.s32.totalorder %s110, %s126
      %p128 = scmp.eq.s32.totalorder %s24, 0
      %p129 = por %p127, %p128
      %p130 = scmp.le.s32.totalorder 1, %s18
      %p131 = scmp.lt.s32.totalorder %s18, 5
      %p132 = pnand %p130, %p131
      %p133 = pneg %p132
      // Predicated region
      $region9: #{tpu_custom_call.1} parent=5 // pred_check
        _
      $region10: #{tpu_custom_call.1} parent=5 // pred_check_branch
        %135 = sbr.rel (%p132) target = $region12
      $region11: #{tpu_custom_call.1} parent=5 // pred_region
        %s136 = ssub.s32 %s18, 1
      $region12: #{tpu_custom_call.1} parent=5 // pred_fallthru
        _
      %p137 = scmp.lt.s32.totalorder %s18, 4
      // Predicated region
      $region13: #{tpu_custom_call.1} parent=5 // pred_check
        %p138 = pneg %p137
      $region14: #{tpu_custom_call.1} parent=5 // pred_check_branch
        %140 = sbr.rel (%p138) target = $region16
      $region15: #{tpu_custom_call.1} parent=5 // pred_region
        // Predicated region
        $region17: #{tpu_custom_call.1} parent=15 // pred_check
          %p141 = pneg %p38
        $region18: #{tpu_custom_call.1} parent=15 // pred_check_branch
          %143 = sbr.rel (%p141) target = $region20
        $region19: #{tpu_custom_call.1} parent=15 // pred_region
          %s144 = sand.u32 %s28, 1
          %s145 = scalar_lea.sflag [#allocation3], %s144
          %s146 = sand.u32 %s28, 1
          %s147 = smul.addr %s146, 256
          %s148 = scalar_lea.vmem [#allocation2], %s147
          %s149 = smul.u32 2, %s18
          %s151 = ssub.s32 4096, 4096
          %152 = vsyncadd %s145, %s151
          %s153 = smul.addr %s149, 128
          %s154 = scalar_lea.hbm %s0, %s153
          %s155 = sshll.u32 %s148, 4
          %s156 = int_to_ptr.vmem [resolvable:$true] %s155
          %161 = dma.hbm_to_vmem [thread:$0]  %s154, 4096, %s156, %s145, 1024, 256, 16
        $region20: #{tpu_custom_call.1} parent=15 // pred_fallthru
          _
        // Predicated region
        $region21: #{tpu_custom_call.1} parent=15 // pred_check
          %p162 = pneg %p64
        $region22: #{tpu_custom_call.1} parent=15 // pred_check_branch
          %164 = sbr.rel (%p162) target = $region24
        $region23: #{tpu_custom_call.1} parent=15 // pred_region
          %s165 = sand.u32 %s18, 1
          %s166 = scalar_lea.sflag [#allocation6], %s165
          %s167 = sand.u32 %s54, 1
          %s168 = smul.addr %s167, 32
          %s169 = scalar_lea.vmem [#allocation5], %s168
          %s170 = smul.u32 2, %s18
          %s172 = ssub.s32 512, 512
          %173 = vsyncadd %s166, %s172
          %s174 = smul.addr %s170, 16
          %s175 = scalar_lea.hbm %s1, %s174
          %s176 = sshll.u32 %s169, 4
          %s177 = int_to_ptr.vmem [resolvable:$true] %s176
          %182 = dma.hbm_to_vmem [thread:$0]  %s175, 512, %s177, %s166, 128, 32, 2
        $region24: #{tpu_custom_call.1} parent=15 // pred_fallthru
          _
        // Predicated region
        $region25: #{tpu_custom_call.1} parent=15 // pred_check
          %p183 = pneg %p90
        $region26: #{tpu_custom_call.1} parent=15 // pred_check_branch
          %185 = sbr.rel (%p183) target = $region28
        $region27: #{tpu_custom_call.1} parent=15 // pred_region
          %s186 = sand.u32 %s18, 1
          %s187 = scalar_lea.sflag [#allocation6], %s186
          %s188 = sand.u32 %s80, 1
          %s189 = smul.addr %s188, 8
          %s190 = scalar_lea.vmem [#allocation7], %s189
          %s191 = smul.u32 2, %s18
          %s193 = ssub.s32 128, 128
          %194 = vsyncadd %s187, %s193
          %s195 = smul.addr %s191, 64
          %s196 = scalar_lea.hbm %s2, %s195
          %s198 = sshll.u32 %s190, 4
          %s199 = int_to_ptr.vmem [resolvable:$true] %s198
          %201 = dma.hbm_to_vmem [thread:$0]  %s196, 128, %s199, %s187
        $region28: #{tpu_custom_call.1} parent=15 // pred_fallthru
          _
      $region16: #{tpu_custom_call.1} parent=5 // pred_fallthru
        _
      %p202 = scmp.le.s32.totalorder 1, %s18
      %p203 = scmp.lt.s32.totalorder %s18, 5
      %p204 = pnand %p202, %p203
      %p205 = pneg %p204
      // Predicated region
      $region29: #{tpu_custom_call.1} parent=5 // pred_check
        _
      $region30: #{tpu_custom_call.1} parent=5 // pred_check_branch
        %207 = sbr.rel (%p204) target = $region32
      $region31: #{tpu_custom_call.1} parent=5 // pred_region
        %s208 = ssub.s32 %s18, 1
        %s209 = sand.u32 %s31, 1
        %s210 = scalar_lea.sflag [#allocation3], %s209
        %s211 = sand.u32 %s31, 1
        %s212 = smul.addr %s211, 256
        %s213 = scalar_lea.vmem [#allocation2], %s212
        // Predicated region
        $region33: #{tpu_custom_call.1} parent=31 // pred_check
          %p214 = pneg %p44
        $region34: #{tpu_custom_call.1} parent=31 // pred_check_branch
          %216 = sbr.rel (%p214) target = $region36
        $region35: #{tpu_custom_call.1} parent=31 // pred_region
          %217 = dma.done %s210, 4096
        $region36: #{tpu_custom_call.1} parent=31 // pred_fallthru
          _
        %s218 = sand.u32 %s23, 1
        %s219 = scalar_lea.sflag [#allocation6], %s218
        %s220 = sand.u32 %s57, 1
        %s221 = smul.addr %s220, 32
        %s222 = scalar_lea.vmem [#allocation5], %s221
        // Predicated region
        $region37: #{tpu_custom_call.1} parent=31 // pred_check
          %p223 = pneg %p70
        $region38: #{tpu_custom_call.1} parent=31 // pred_check_branch
          %225 = sbr.rel (%p223) target = $region40
        $region39: #{tpu_custom_call.1} parent=31 // pred_region
          %226 = dma.done %s219, 512
        $region40: #{tpu_custom_call.1} parent=31 // pred_fallthru
          _
        %s227 = sand.u32 %s23, 1
        %s228 = scalar_lea.sflag [#allocation6], %s227
        %s229 = sand.u32 %s83, 1
        %s230 = smul.addr %s229, 8
        %s231 = scalar_lea.vmem [#allocation7], %s230
        // Predicated region
        $region41: #{tpu_custom_call.1} parent=31 // pred_check
          %p232 = pneg %p96
        $region42: #{tpu_custom_call.1} parent=31 // pred_check_branch
          %234 = sbr.rel (%p232) target = $region44
        $region43: #{tpu_custom_call.1} parent=31 // pred_region
          %235 = dma.done %s228, 128
        $region44: #{tpu_custom_call.1} parent=31 // pred_fallthru
          _
        %s236 = sand.u32 %s31, 1
        %s237 = scalar_lea.sflag [#allocation3], %s236
        %s238 = sand.u32 %s31, 1
        %s239 = smul.addr %s238, 256
        %s240 = scalar_lea.vmem [#allocation2], %s239
        %p241 = pneg %p44
        %p242 = pneg %p41
        %s243 = sand.u32 %s23, 1
        %s244 = scalar_lea.sflag [#allocation6], %s243
        %s245 = sand.u32 %s57, 1
        %s246 = smul.addr %s245, 32
        %s247 = scalar_lea.vmem [#allocation5], %s246
        %p248 = pneg %p70
        %p249 = pneg %p67
        %s250 = sand.u32 %s23, 1
        %s251 = scalar_lea.sflag [#allocation6], %s250
        %s252 = sand.u32 %s83, 1
        %s253 = smul.addr %s252, 8
        %s254 = scalar_lea.vmem [#allocation7], %s253
        %p255 = pneg %p96
        %p256 = pneg %p93
        %p257 = pneg %p122
        %p258 = pneg %p119
        %s259 = sand.u32 %s109, 1
        %s260 = scalar_lea.sflag [#allocation4], %s259
        %s261 = sand.u32 %s109, 1
        %s262 = smul.addr %s261, 16
        %s263 = scalar_lea.vmem [#allocation8], %s262
        %s264 = smul.u32 2, %s23
        %s265 = smul.u32 2, %s23
        %s266 = smul.u32 2, %s23
        %s267 = smul.u32 2, %s23
        %v268 = vld [vmem:[%s213] sm:$0xff]
        %v269 = vld [vmem:[%s213 + $0x8] sm:$0xff]
        %vm270 = vcmp.ne.f32.partialorder %v268, %v268
        %vm271 = vcmp.ne.f32.partialorder %v269, %v269
        %v272 = vsel %vm270, 0.0, %v268
        %v273 = vsel %vm271, 0.0, %v269
        %vm274 = vcmp.eq.f32.partialorder %v272, inf
        %vm275 = vcmp.eq.f32.partialorder %v273, inf
        %v276 = vsel %vm274, 3.4028235e+38, %v272
        %v277 = vsel %vm275, 3.4028235e+38, %v273
        %vm278 = vcmp.eq.f32.partialorder %v276, -inf
        %vm279 = vcmp.eq.f32.partialorder %v277, -inf
        %v280 = vsel %vm278, -3.4028235e+38, %v276
        %v281 = vsel %vm279, -3.4028235e+38, %v277
        %v282 = vld [vmem:[%s222] sm:$0x3]
        %v284 = vlaneseq
        %v285 = vshrl.u32 %v284, 7
        %v286 = vsub.s32 0, %v285
        %v287 = vrot.slane %v282, %v286
        %v288 = vlaneseq
        %v289 = vshrl.u32 %v288, 7
        %v290 = vsub.s32 1, %v289
        %v291 = vrot.slane %v282, %v290
        %v294 = vmul.f32 %v287, %v280
        %v295 = vmul.f32 %v291, %v281
        %v296 = vadd.f32 %v294, 0.0
        %v297 = vadd.f32 %v295, 0.0
        %v298 = vadd.f32 %v282, 0.0
        %s299 = scalar_lea.vmem %s213, 16 [#allocation2]
        %v300 = vld [vmem:[%s299] sm:$0xff]
        %v301 = vld [vmem:[%s299 + $0x8] sm:$0xff]
        %vm302 = vcmp.ne.f32.partialorder %v300, %v300
        %vm303 = vcmp.ne.f32.partialorder %v301, %v301
        %v304 = vsel %vm302, 0.0, %v300
        %v305 = vsel %vm303, 0.0, %v301
        %vm306 = vcmp.eq.f32.partialorder %v304, inf
        %vm307 = vcmp.eq.f32.partialorder %v305, inf
        %v308 = vsel %vm306, 3.4028235e+38, %v304
        %v309 = vsel %vm307, 3.4028235e+38, %v305
        %vm310 = vcmp.eq.f32.partialorder %v308, -inf
        %vm311 = vcmp.eq.f32.partialorder %v309, -inf
        %v312 = vsel %vm310, -3.4028235e+38, %v308
        %v313 = vsel %vm311, -3.4028235e+38, %v309
        %s314 = scalar_lea.vmem %s222, 2 [#allocation5]
        %v315 = vld [vmem:[%s314] sm:$0x3]
        %v317 = vlaneseq
        %v318 = vshrl.u32 %v317, 7
        %v319 = vsub.s32 0, %v318
        %v320 = vrot.slane %v315, %v319
        %v321 = vlaneseq
        %v322 = vshrl.u32 %v321, 7
        %v323 = vsub.s32 1, %v322
        %v324 = vrot.slane %v315, %v323
        %v327 = vmul.f32 %v320, %v312
        %v328 = vmul.f32 %v324, %v313
        %v329 = vadd.f32 %v296, %v327
        %v330 = vadd.f32 %v297, %v328
        %v331 = vadd.f32 %v298, %v315
        %s332 = scalar_lea.vmem %s213, 32 [#allocation2]
        %v333 = vld [vmem:[%s332] sm:$0xff]
        %v334 = vld [vmem:[%s332 + $0x8] sm:$0xff]
        %vm335 = vcmp.ne.f32.partialorder %v333, %v333
        %vm336 = vcmp.ne.f32.partialorder %v334, %v334
        %v337 = vsel %vm335, 0.0, %v333
        %v338 = vsel %vm336, 0.0, %v334
        %vm339 = vcmp.eq.f32.partialorder %v337, inf
        %vm340 = vcmp.eq.f32.partialorder %v338, inf
        %v341 = vsel %vm339, 3.4028235e+38, %v337
        %v342 = vsel %vm340, 3.4028235e+38, %v338
        %vm343 = vcmp.eq.f32.partialorder %v341, -inf
        %vm344 = vcmp.eq.f32.partialorder %v342, -inf
        %v345 = vsel %vm343, -3.4028235e+38, %v341
        %v346 = vsel %vm344, -3.4028235e+38, %v342
        %s347 = scalar_lea.vmem %s222, 4 [#allocation5]
        %v348 = vld [vmem:[%s347] sm:$0x3]
        %v350 = vlaneseq
        %v351 = vshrl.u32 %v350, 7
        %v352 = vsub.s32 0, %v351
        %v353 = vrot.slane %v348, %v352
        %v354 = vlaneseq
        %v355 = vshrl.u32 %v354, 7
        %v356 = vsub.s32 1, %v355
        %v357 = vrot.slane %v348, %v356
        %v360 = vmul.f32 %v353, %v345
        %v361 = vmul.f32 %v357, %v346
        %v362 = vadd.f32 %v329, %v360
        %v363 = vadd.f32 %v330, %v361
        %v364 = vadd.f32 %v331, %v348
        %s365 = scalar_lea.vmem %s213, 48 [#allocation2]
        %v366 = vld [vmem:[%s365] sm:$0xff]
        %v367 = vld [vmem:[%s365 + $0x8] sm:$0xff]
        %vm368 = vcmp.ne.f32.partialorder %v366, %v366
        %vm369 = vcmp.ne.f32.partialorder %v367, %v367
        %v370 = vsel %vm368, 0.0, %v366
        %v371 = vsel %vm369, 0.0, %v367
        %vm372 = vcmp.eq.f32.partialorder %v370, inf
        %vm373 = vcmp.eq.f32.partialorder %v371, inf
        %v374 = vsel %vm372, 3.4028235e+38, %v370
        %v375 = vsel %vm373, 3.4028235e+38, %v371
        %vm376 = vcmp.eq.f32.partialorder %v374, -inf
        %vm377 = vcmp.eq.f32.partialorder %v375, -inf
        %v378 = vsel %vm376, -3.4028235e+38, %v374
        %v379 = vsel %vm377, -3.4028235e+38, %v375
        %s380 = scalar_lea.vmem %s222, 6 [#allocation5]
        %v381 = vld [vmem:[%s380] sm:$0x3]
        %v383 = vlaneseq
        %v384 = vshrl.u32 %v383, 7
        %v385 = vsub.s32 0, %v384
        %v386 = vrot.slane %v381, %v385
        %v387 = vlaneseq
        %v388 = vshrl.u32 %v387, 7
        %v389 = vsub.s32 1, %v388
        %v390 = vrot.slane %v381, %v389
        %v393 = vmul.f32 %v386, %v378
        %v394 = vmul.f32 %v390, %v379
        %v395 = vadd.f32 %v362, %v393
        %v396 = vadd.f32 %v363, %v394
        %v397 = vadd.f32 %v364, %v381
        %s398 = scalar_lea.vmem %s213, 64 [#allocation2]
        %v399 = vld [vmem:[%s398] sm:$0xff]
        %v400 = vld [vmem:[%s398 + $0x8] sm:$0xff]
        %vm401 = vcmp.ne.f32.partialorder %v399, %v399
        %vm402 = vcmp.ne.f32.partialorder %v400, %v400
        %v403 = vsel %vm401, 0.0, %v399
        %v404 = vsel %vm402, 0.0, %v400
        %vm405 = vcmp.eq.f32.partialorder %v403, inf
        %vm406 = vcmp.eq.f32.partialorder %v404, inf
        %v407 = vsel %vm405, 3.4028235e+38, %v403
        %v408 = vsel %vm406, 3.4028235e+38, %v404
        %vm409 = vcmp.eq.f32.partialorder %v407, -inf
        %vm410 = vcmp.eq.f32.partialorder %v408, -inf
        %v411 = vsel %vm409, -3.4028235e+38, %v407
        %v412 = vsel %vm410, -3.4028235e+38, %v408
        %s413 = scalar_lea.vmem %s222, 8 [#allocation5]
        %v414 = vld [vmem:[%s413] sm:$0x3]
        %v416 = vlaneseq
        %v417 = vshrl.u32 %v416, 7
        %v418 = vsub.s32 0, %v417
        %v419 = vrot.slane %v414, %v418
        %v420 = vlaneseq
        %v421 = vshrl.u32 %v420, 7
        %v422 = vsub.s32 1, %v421
        %v423 = vrot.slane %v414, %v422
        %v426 = vmul.f32 %v419, %v411
        %v427 = vmul.f32 %v423, %v412
        %v428 = vadd.f32 %v395, %v426
        %v429 = vadd.f32 %v396, %v427
        %v430 = vadd.f32 %v397, %v414
        %s431 = scalar_lea.vmem %s213, 80 [#allocation2]
        %v432 = vld [vmem:[%s431] sm:$0xff]
        %v433 = vld [vmem:[%s431 + $0x8] sm:$0xff]
        %vm434 = vcmp.ne.f32.partialorder %v432, %v432
        %vm435 = vcmp.ne.f32.partialorder %v433, %v433
        %v436 = vsel %vm434, 0.0, %v432
        %v437 = vsel %vm435, 0.0, %v433
        %vm438 = vcmp.eq.f32.partialorder %v436, inf
        %vm439 = vcmp.eq.f32.partialorder %v437, inf
        %v440 = vsel %vm438, 3.4028235e+38, %v436
        %v441 = vsel %vm439, 3.4028235e+38, %v437
        %vm442 = vcmp.eq.f32.partialorder %v440, -inf
        %vm443 = vcmp.eq.f32.partialorder %v441, -inf
        %v444 = vsel %vm442, -3.4028235e+38, %v440
        %v445 = vsel %vm443, -3.4028235e+38, %v441
        %s446 = scalar_lea.vmem %s222, 10 [#allocation5]
        %v447 = vld [vmem:[%s446] sm:$0x3]
        %v449 = vlaneseq
        %v450 = vshrl.u32 %v449, 7
        %v451 = vsub.s32 0, %v450
        %v452 = vrot.slane %v447, %v451
        %v453 = vlaneseq
        %v454 = vshrl.u32 %v453, 7
        %v455 = vsub.s32 1, %v454
        %v456 = vrot.slane %v447, %v455
        %v459 = vmul.f32 %v452, %v444
        %v460 = vmul.f32 %v456, %v445
        %v461 = vadd.f32 %v428, %v459
        %v462 = vadd.f32 %v429, %v460
        %v463 = vadd.f32 %v430, %v447
        %s464 = scalar_lea.vmem %s213, 96 [#allocation2]
        %v465 = vld [vmem:[%s464] sm:$0xff]
        %v466 = vld [vmem:[%s464 + $0x8] sm:$0xff]
        %vm467 = vcmp.ne.f32.partialorder %v465, %v465
        %vm468 = vcmp.ne.f32.partialorder %v466, %v466
        %v469 = vsel %vm467, 0.0, %v465
        %v470 = vsel %vm468, 0.0, %v466
        %vm471 = vcmp.eq.f32.partialorder %v469, inf
        %vm472 = vcmp.eq.f32.partialorder %v470, inf
        %v473 = vsel %vm471, 3.4028235e+38, %v469
        %v474 = vsel %vm472, 3.4028235e+38, %v470
        %vm475 = vcmp.eq.f32.partialorder %v473, -inf
        %vm476 = vcmp.eq.f32.partialorder %v474, -inf
        %v477 = vsel %vm475, -3.4028235e+38, %v473
        %v478 = vsel %vm476, -3.4028235e+38, %v474
        %s479 = scalar_lea.vmem %s222, 12 [#allocation5]
        %v480 = vld [vmem:[%s479] sm:$0x3]
        %v482 = vlaneseq
        %v483 = vshrl.u32 %v482, 7
        %v484 = vsub.s32 0, %v483
        %v485 = vrot.slane %v480, %v484
        %v486 = vlaneseq
        %v487 = vshrl.u32 %v486, 7
        %v488 = vsub.s32 1, %v487
        %v489 = vrot.slane %v480, %v488
        %v492 = vmul.f32 %v485, %v477
        %v493 = vmul.f32 %v489, %v478
        %v494 = vadd.f32 %v461, %v492
        %v495 = vadd.f32 %v462, %v493
        %v496 = vadd.f32 %v463, %v480
        %s497 = scalar_lea.vmem %s213, 112 [#allocation2]
        %v498 = vld [vmem:[%s497] sm:$0xff]
        %v499 = vld [vmem:[%s497 + $0x8] sm:$0xff]
        %vm500 = vcmp.ne.f32.partialorder %v498, %v498
        %vm501 = vcmp.ne.f32.partialorder %v499, %v499
        %v502 = vsel %vm500, 0.0, %v498
        %v503 = vsel %vm501, 0.0, %v499
        %vm504 = vcmp.eq.f32.partialorder %v502, inf
        %vm505 = vcmp.eq.f32.partialorder %v503, inf
        %v506 = vsel %vm504, 3.4028235e+38, %v502
        %v507 = vsel %vm505, 3.4028235e+38, %v503
        %vm508 = vcmp.eq.f32.partialorder %v506, -inf
        %vm509 = vcmp.eq.f32.partialorder %v507, -inf
        %v510 = vsel %vm508, -3.4028235e+38, %v506
        %v511 = vsel %vm509, -3.4028235e+38, %v507
        %s512 = scalar_lea.vmem %s222, 14 [#allocation5]
        %v513 = vld [vmem:[%s512] sm:$0x3]
        %v515 = vlaneseq
        %v516 = vshrl.u32 %v515, 7
        %v517 = vsub.s32 0, %v516
        %v518 = vrot.slane %v513, %v517
        %v519 = vlaneseq
        %v520 = vshrl.u32 %v519, 7
        %v521 = vsub.s32 1, %v520
        %v522 = vrot.slane %v513, %v521
        %v525 = vmul.f32 %v518, %v510
        %v526 = vmul.f32 %v522, %v511
        %v527 = vadd.f32 %v494, %v525
        %v528 = vadd.f32 %v495, %v526
        %v529 = vadd.f32 %v496, %v513
        %s530 = scalar_lea.vmem %s213, 128 [#allocation2]
        %v531 = vld [vmem:[%s530] sm:$0xff]
        %v532 = vld [vmem:[%s530 + $0x8] sm:$0xff]
        %vm533 = vcmp.ne.f32.partialorder %v531, %v531
        %vm534 = vcmp.ne.f32.partialorder %v532, %v532
        %v535 = vsel %vm533, 0.0, %v531
        %v536 = vsel %vm534, 0.0, %v532
        %vm537 = vcmp.eq.f32.partialorder %v535, inf
        %vm538 = vcmp.eq.f32.partialorder %v536, inf
        %v539 = vsel %vm537, 3.4028235e+38, %v535
        %v540 = vsel %vm538, 3.4028235e+38, %v536
        %vm541 = vcmp.eq.f32.partialorder %v539, -inf
        %vm542 = vcmp.eq.f32.partialorder %v540, -inf
        %v543 = vsel %vm541, -3.4028235e+38, %v539
        %v544 = vsel %vm542, -3.4028235e+38, %v540
        %s545 = scalar_lea.vmem %s222, 16 [#allocation5]
        %v546 = vld [vmem:[%s545] sm:$0x3]
        %v548 = vlaneseq
        %v549 = vshrl.u32 %v548, 7
        %v550 = vsub.s32 0, %v549
        %v551 = vrot.slane %v546, %v550
        %v552 = vlaneseq
        %v553 = vshrl.u32 %v552, 7
        %v554 = vsub.s32 1, %v553
        %v555 = vrot.slane %v546, %v554
        %v558 = vmul.f32 %v551, %v543
        %v559 = vmul.f32 %v555, %v544
        %v560 = vadd.f32 %v527, %v558
        %v561 = vadd.f32 %v528, %v559
        %v562 = vadd.f32 %v529, %v546
        %s563 = scalar_lea.vmem %s213, 144 [#allocation2]
        %v564 = vld [vmem:[%s563] sm:$0xff]
        %v565 = vld [vmem:[%s563 + $0x8] sm:$0xff]
        %vm566 = vcmp.ne.f32.partialorder %v564, %v564
        %vm567 = vcmp.ne.f32.partialorder %v565, %v565
        %v568 = vsel %vm566, 0.0, %v564
        %v569 = vsel %vm567, 0.0, %v565
        %vm570 = vcmp.eq.f32.partialorder %v568, inf
        %vm571 = vcmp.eq.f32.partialorder %v569, inf
        %v572 = vsel %vm570, 3.4028235e+38, %v568
        %v573 = vsel %vm571, 3.4028235e+38, %v569
        %vm574 = vcmp.eq.f32.partialorder %v572, -inf
        %vm575 = vcmp.eq.f32.partialorder %v573, -inf
        %v576 = vsel %vm574, -3.4028235e+38, %v572
        %v577 = vsel %vm575, -3.4028235e+38, %v573
        %s578 = scalar_lea.vmem %s222, 18 [#allocation5]
        %v579 = vld [vmem:[%s578] sm:$0x3]
        %v581 = vlaneseq
        %v582 = vshrl.u32 %v581, 7
        %v583 = vsub.s32 0, %v582
        %v584 = vrot.slane %v579, %v583
        %v585 = vlaneseq
        %v586 = vshrl.u32 %v585, 7
        %v587 = vsub.s32 1, %v586
        %v588 = vrot.slane %v579, %v587
        %v591 = vmul.f32 %v584, %v576
        %v592 = vmul.f32 %v588, %v577
        %v593 = vadd.f32 %v560, %v591
        %v594 = vadd.f32 %v561, %v592
        %v595 = vadd.f32 %v562, %v579
        %s596 = scalar_lea.vmem %s213, 160 [#allocation2]
        %v597 = vld [vmem:[%s596] sm:$0xff]
        %v598 = vld [vmem:[%s596 + $0x8] sm:$0xff]
        %vm599 = vcmp.ne.f32.partialorder %v597, %v597
        %vm600 = vcmp.ne.f32.partialorder %v598, %v598
        %v601 = vsel %vm599, 0.0, %v597
        %v602 = vsel %vm600, 0.0, %v598
        %vm603 = vcmp.eq.f32.partialorder %v601, inf
        %vm604 = vcmp.eq.f32.partialorder %v602, inf
        %v605 = vsel %vm603, 3.4028235e+38, %v601
        %v606 = vsel %vm604, 3.4028235e+38, %v602
        %vm607 = vcmp.eq.f32.partialorder %v605, -inf
        %vm608 = vcmp.eq.f32.partialorder %v606, -inf
        %v609 = vsel %vm607, -3.4028235e+38, %v605
        %v610 = vsel %vm608, -3.4028235e+38, %v606
        %s611 = scalar_lea.vmem %s222, 20 [#allocation5]
        %v612 = vld [vmem:[%s611] sm:$0x3]
        %v614 = vlaneseq
        %v615 = vshrl.u32 %v614, 7
        %v616 = vsub.s32 0, %v615
        %v617 = vrot.slane %v612, %v616
        %v618 = vlaneseq
        %v619 = vshrl.u32 %v618, 7
        %v620 = vsub.s32 1, %v619
        %v621 = vrot.slane %v612, %v620
        %v624 = vmul.f32 %v617, %v609
        %v625 = vmul.f32 %v621, %v610
        %v626 = vadd.f32 %v593, %v624
        %v627 = vadd.f32 %v594, %v625
        %v628 = vadd.f32 %v595, %v612
        %s629 = scalar_lea.vmem %s213, 176 [#allocation2]
        %v630 = vld [vmem:[%s629] sm:$0xff]
        %v631 = vld [vmem:[%s629 + $0x8] sm:$0xff]
        %vm632 = vcmp.ne.f32.partialorder %v630, %v630
        %vm633 = vcmp.ne.f32.partialorder %v631, %v631
        %v634 = vsel %vm632, 0.0, %v630
        %v635 = vsel %vm633, 0.0, %v631
        %vm636 = vcmp.eq.f32.partialorder %v634, inf
        %vm637 = vcmp.eq.f32.partialorder %v635, inf
        %v638 = vsel %vm636, 3.4028235e+38, %v634
        %v639 = vsel %vm637, 3.4028235e+38, %v635
        %vm640 = vcmp.eq.f32.partialorder %v638, -inf
        %vm641 = vcmp.eq.f32.partialorder %v639, -inf
        %v642 = vsel %vm640, -3.4028235e+38, %v638
        %v643 = vsel %vm641, -3.4028235e+38, %v639
        %s644 = scalar_lea.vmem %s222, 22 [#allocation5]
        %v645 = vld [vmem:[%s644] sm:$0x3]
        %v647 = vlaneseq
        %v648 = vshrl.u32 %v647, 7
        %v649 = vsub.s32 0, %v648
        %v650 = vrot.slane %v645, %v649
        %v651 = vlaneseq
        %v652 = vshrl.u32 %v651, 7
        %v653 = vsub.s32 1, %v652
        %v654 = vrot.slane %v645, %v653
        %v657 = vmul.f32 %v650, %v642
        %v658 = vmul.f32 %v654, %v643
        %v659 = vadd.f32 %v626, %v657
        %v660 = vadd.f32 %v627, %v658
        %v661 = vadd.f32 %v628, %v645
        %s662 = scalar_lea.vmem %s213, 192 [#allocation2]
        %v663 = vld [vmem:[%s662] sm:$0xff]
        %v664 = vld [vmem:[%s662 + $0x8] sm:$0xff]
        %vm665 = vcmp.ne.f32.partialorder %v663, %v663
        %vm666 = vcmp.ne.f32.partialorder %v664, %v664
        %v667 = vsel %vm665, 0.0, %v663
        %v668 = vsel %vm666, 0.0, %v664
        %vm669 = vcmp.eq.f32.partialorder %v667, inf
        %vm670 = vcmp.eq.f32.partialorder %v668, inf
        %v671 = vsel %vm669, 3.4028235e+38, %v667
        %v672 = vsel %vm670, 3.4028235e+38, %v668
        %vm673 = vcmp.eq.f32.partialorder %v671, -inf
        %vm674 = vcmp.eq.f32.partialorder %v672, -inf
        %v675 = vsel %vm673, -3.4028235e+38, %v671
        %v676 = vsel %vm674, -3.4028235e+38, %v672
        %s677 = scalar_lea.vmem %s222, 24 [#allocation5]
        %v678 = vld [vmem:[%s677] sm:$0x3]
        %v680 = vlaneseq
        %v681 = vshrl.u32 %v680, 7
        %v682 = vsub.s32 0, %v681
        %v683 = vrot.slane %v678, %v682
        %v684 = vlaneseq
        %v685 = vshrl.u32 %v684, 7
        %v686 = vsub.s32 1, %v685
        %v687 = vrot.slane %v678, %v686
        %v690 = vmul.f32 %v683, %v675
        %v691 = vmul.f32 %v687, %v676
        %v692 = vadd.f32 %v659, %v690
        %v693 = vadd.f32 %v660, %v691
        %v694 = vadd.f32 %v661, %v678
        %s695 = scalar_lea.vmem %s213, 208 [#allocation2]
        %v696 = vld [vmem:[%s695] sm:$0xff]
        %v697 = vld [vmem:[%s695 + $0x8] sm:$0xff]
        %vm698 = vcmp.ne.f32.partialorder %v696, %v696
        %vm699 = vcmp.ne.f32.partialorder %v697, %v697
        %v700 = vsel %vm698, 0.0, %v696
        %v701 = vsel %vm699, 0.0, %v697
        %vm702 = vcmp.eq.f32.partialorder %v700, inf
        %vm703 = vcmp.eq.f32.partialorder %v701, inf
        %v704 = vsel %vm702, 3.4028235e+38, %v700
        %v705 = vsel %vm703, 3.4028235e+38, %v701
        %vm706 = vcmp.eq.f32.partialorder %v704, -inf
        %vm707 = vcmp.eq.f32.partialorder %v705, -inf
        %v708 = vsel %vm706, -3.4028235e+38, %v704
        %v709 = vsel %vm707, -3.4028235e+38, %v705
        %s710 = scalar_lea.vmem %s222, 26 [#allocation5]
        %v711 = vld [vmem:[%s710] sm:$0x3]
        %v713 = vlaneseq
        %v714 = vshrl.u32 %v713, 7
        %v715 = vsub.s32 0, %v714
        %v716 = vrot.slane %v711, %v715
        %v717 = vlaneseq
        %v718 = vshrl.u32 %v717, 7
        %v719 = vsub.s32 1, %v718
        %v720 = vrot.slane %v711, %v719
        %v723 = vmul.f32 %v716, %v708
        %v724 = vmul.f32 %v720, %v709
        %v725 = vadd.f32 %v692, %v723
        %v726 = vadd.f32 %v693, %v724
        %v727 = vadd.f32 %v694, %v711
        %s728 = scalar_lea.vmem %s213, 224 [#allocation2]
        %v729 = vld [vmem:[%s728] sm:$0xff]
        %v730 = vld [vmem:[%s728 + $0x8] sm:$0xff]
        %vm731 = vcmp.ne.f32.partialorder %v729, %v729
        %vm732 = vcmp.ne.f32.partialorder %v730, %v730
        %v733 = vsel %vm731, 0.0, %v729
        %v734 = vsel %vm732, 0.0, %v730
        %vm735 = vcmp.eq.f32.partialorder %v733, inf
        %vm736 = vcmp.eq.f32.partialorder %v734, inf
        %v737 = vsel %vm735, 3.4028235e+38, %v733
        %v738 = vsel %vm736, 3.4028235e+38, %v734
        %vm739 = vcmp.eq.f32.partialorder %v737, -inf
        %vm740 = vcmp.eq.f32.partialorder %v738, -inf
        %v741 = vsel %vm739, -3.4028235e+38, %v737
        %v742 = vsel %vm740, -3.4028235e+38, %v738
        %s743 = scalar_lea.vmem %s222, 28 [#allocation5]
        %v744 = vld [vmem:[%s743] sm:$0x3]
        %v746 = vlaneseq
        %v747 = vshrl.u32 %v746, 7
        %v748 = vsub.s32 0, %v747
        %v749 = vrot.slane %v744, %v748
        %v750 = vlaneseq
        %v751 = vshrl.u32 %v750, 7
        %v752 = vsub.s32 1, %v751
        %v753 = vrot.slane %v744, %v752
        %v756 = vmul.f32 %v749, %v741
        %v757 = vmul.f32 %v753, %v742
        %v758 = vadd.f32 %v725, %v756
        %v759 = vadd.f32 %v726, %v757
        %v760 = vadd.f32 %v727, %v744
        %s761 = scalar_lea.vmem %s213, 240 [#allocation2]
        %v762 = vld [vmem:[%s761] sm:$0xff]
        %v763 = vld [vmem:[%s761 + $0x8] sm:$0xff]
        %vm764 = vcmp.ne.f32.partialorder %v762, %v762
        %vm765 = vcmp.ne.f32.partialorder %v763, %v763
        %v766 = vsel %vm764, 0.0, %v762
        %v767 = vsel %vm765, 0.0, %v763
        %vm768 = vcmp.eq.f32.partialorder %v766, inf
        %vm769 = vcmp.eq.f32.partialorder %v767, inf
        %v770 = vsel %vm768, 3.4028235e+38, %v766
        %v771 = vsel %vm769, 3.4028235e+38, %v767
        %vm772 = vcmp.eq.f32.partialorder %v770, -inf
        %vm773 = vcmp.eq.f32.partialorder %v771, -inf
        %v774 = vsel %vm772, -3.4028235e+38, %v770
        %v775 = vsel %vm773, -3.4028235e+38, %v771
        %s776 = scalar_lea.vmem %s222, 30 [#allocation5]
        %v777 = vld [vmem:[%s776] sm:$0x3]
        %v779 = vlaneseq
        %v780 = vshrl.u32 %v779, 7
        %v781 = vsub.s32 0, %v780
        %v782 = vrot.slane %v777, %v781
        %v783 = vlaneseq
        %v784 = vshrl.u32 %v783, 7
        %v785 = vsub.s32 1, %v784
        %v786 = vrot.slane %v777, %v785
        %v789 = vmul.f32 %v782, %v774
        %v790 = vmul.f32 %v786, %v775
        %v791 = vadd.f32 %v758, %v789
        %v792 = vadd.f32 %v759, %v790
        %v793 = vadd.f32 %v760, %v777
        %794 = vst [vmem:[%s263] sm:$0xff] %v791
        %795 = vst [vmem:[%s263 + $0x8] sm:$0xff] %v792
        %v796 = vld [vmem:[%s231] sm:$0x77]
        %v797 = vsub.f32 1.0, %v793
        %v799 = vlaneseq
        %v800 = vshrl.u32 %v799, 7
        %v801 = vsub.s32 0, %v800
        %v802 = vrot.slane %v797, %v801
        %v803 = vlaneseq
        %v804 = vshrl.u32 %v803, 7
        %v805 = vsub.s32 1, %v804
        %v806 = vrot.slane %v797, %v805
        %v807 = vcombine.low %v802, %v806
        %v809 = vmul.f32 %v796, %v807
        %v811 = vcombine.high %v809, %v809
        %v813 = vadd.f32 %v791, %v809
        %v814 = vadd.f32 %v792, %v811
        %815 = vst [vmem:[%s263] sm:$0x7] %v813
        %816 = vst [vmem:[%s263 + $0x8] sm:$0x7] %v814
        %s817 = sand.u32 %s109, 1
        %s818 = scalar_lea.sflag [#allocation4], %s817
        %s819 = sand.u32 %s109, 1
        %s820 = smul.addr %s819, 16
        %s821 = scalar_lea.vmem [#allocation8], %s820
        // Predicated region
        $region45: #{tpu_custom_call.1} parent=31 // pred_check
          %p822 = pneg %p119
        $region46: #{tpu_custom_call.1} parent=31 // pred_check_branch
          %824 = sbr.rel (%p822) target = $region48
        $region47: #{tpu_custom_call.1} parent=31 // pred_region
          %s825 = smul.u32 2, %s23
          %s827 = ssub.s32 256, 256
          %828 = vsyncadd %s818, %s827
          %s829 = smul.addr %s825, 128
          %s830 = scalar_lea.hbm %s3, %s829
          %s832 = sshll.u32 %s821, 4
          %s833 = int_to_ptr.vmem [resolvable:$true] %s832
          %835 = dma.vmem_to_hbm [thread:$0]  %s833, 256, %s830, %s818
        $region48: #{tpu_custom_call.1} parent=31 // pred_fallthru
          _
      $region32: #{tpu_custom_call.1} parent=5 // pred_fallthru
        _
      %p836 = scmp.le.s32.totalorder 2, %s18
      // Predicated region
      $region49: #{tpu_custom_call.1} parent=5 // pred_check
        %p837 = pneg %p836
      $region50: #{tpu_custom_call.1} parent=5 // pred_check_branch
        %839 = sbr.rel (%p837) target = $region52
      $region51: #{tpu_custom_call.1} parent=5 // pred_region
        %s840 = ssub.s32 %s18, 2
        // Predicated region
        $region53: #{tpu_custom_call.1} parent=51 // pred_check
          %p841 = pneg %p125
        $region54: #{tpu_custom_call.1} parent=51 // pred_check_branch
          %843 = sbr.rel (%p841) target = $region56
        $region55: #{tpu_custom_call.1} parent=51 // pred_region
          %s844 = sand.u32 %s110, 1
          %s845 = scalar_lea.sflag [#allocation4], %s844
          %s846 = sand.u32 %s110, 1
          %s847 = smul.addr %s846, 16
          %s848 = scalar_lea.vmem [#allocation8], %s847
          %849 = dma.done %s845, 256
        $region56: #{tpu_custom_call.1} parent=51 // pred_fallthru
          _
      $region52: #{tpu_custom_call.1} parent=5 // pred_fallthru
        _
    $region6: #{tpu_custom_call.1} parent=1 // loop_footer
      %s22 = sadd.s32 1, %s18
    $region7: #{tpu_custom_call.1} parent=1 // loop_footer_branch
      %17 = sbr.rel target = $region3
    $region8: #{tpu_custom_call.1} parent=1 // loop_exit
      _
    %850 = vsyncpa [#allocation3], 1
    %s851 = scalar_lea.sflag [#allocation3], 1
    %852 = vsyncpa %s851, 1
    %853 = vsyncpa [#allocation6], 1
    %s854 = scalar_lea.sflag [#allocation6], 1
    %855 = vsyncpa %s854, 1
    %856 = vsyncpa [#allocation4], 1
    %s857 = scalar_lea.sflag [#allocation4], 1
    %858 = vsyncpa %s857, 1

</llo_original>
